<compile_context>
chip_gen: v6e
topology: v6e:2x2x1
jax: 0.10.0
libtpu: 0.0.40
codegen_flags: <defaults>
</compile_context>

<pallas_src>
import functools

import jax
import jax.numpy as jnp
from jax.experimental import pallas as pl
from jax.experimental.pallas import tpu as pltpu


IN_DIM = 13
HID = 64
LATENT = 13   # hidden_dim default in the PyTorch module
F_PAD = 16    # 13 padded up to a sublane-friendly size (row 13 = ones-row)


def _round_up(n, m):
    return ((n + m - 1) // m) * m


def _choose_tb(B, cap=4096, min_tiles=2):
    """Pick the batch-tile (lane) size.

    Prefers the largest multiple-of-128 tile <= cap that divides
    round_up(B,128) exactly (no padded-tail waste beyond the 128 rounding) and
    leaves >= min_tiles grid steps (so v7x's two TensorCores both get work via
    the "parallel" grid axis).  Falls back to `cap` (accepting a small tail)
    when B is large but awkwardly factored, so per-step overhead stays
    amortized.
    """
    b128 = _round_up(max(int(B), 1), 128)
    m = b128 // 128
    max_d = min(m, cap // 128)
    divs = [d for d in range(1, max_d + 1) if m % d == 0]
    pref = [d for d in divs if m // d >= min_tiles] or divs
    tb = 128 * max(pref)
    if m >= 2 * (cap // 128) and tb < cap // 2:
        tb = cap
    return tb


def _default_act_dtype():
    """bf16 bias/tanh math on chips with bf16 VPU/EUP paths (v6e, v7x);
    f32 elsewhere (v5e and older have f32-only VPU/EUP)."""
    try:
        kind = jax.devices()[0].device_kind.lower()
    except Exception:
        return jnp.float32
    if "v6" in kind or "v7" in kind or "tpu7" in kind:
        return jnp.bfloat16
    return jnp.float32


def _ae_kernel(xt_ref,
               w1_ref,
               w2_ref, b2_ref,
               w3_ref, b3_ref,
               w4_ref, b4_ref,
               o_ref, *, act_dtype):
    # Feature-major layout: rows = padded features, columns (lanes) = batch.
    f32 = jnp.float32
    bf16 = jnp.bfloat16
    xt = xt_ref[...]                                                 # (F_PAD, TB) bf16

    # encoder Linear(13,64) + bias (folded into column 13 via the ones-row) -> tanh
    a1 = jnp.dot(w1_ref[...], xt, preferred_element_type=f32)       # (HID, TB) f32
    h1 = jnp.tanh(a1.astype(act_dtype))

    # encoder Linear(64,13) -> tanh
    a2 = jnp.dot(w2_ref[...], h1.astype(bf16),
                 preferred_element_type=f32)                        # (F_PAD, TB)
    z = jnp.tanh(a2.astype(act_dtype) + b2_ref[...].astype(act_dtype))

    # decoder Linear(13,64) -> tanh
    a3 = jnp.dot(w3_ref[...], z.astype(bf16),
                 preferred_element_type=f32)                        # (HID, TB)
    h2 = jnp.tanh(a3.astype(act_dtype) + b3_ref[...].astype(act_dtype))

    # decoder Linear(64,13)  (no activation)
    a4 = jnp.dot(w4_ref[...], h2.astype(bf16),
                 preferred_element_type=f32)                        # (F_PAD, TB)
    y = a4.astype(act_dtype) + b4_ref[...].astype(act_dtype)

    o_ref[...] = y.astype(o_ref.dtype)                              # bf16, lane-dense


def init_params(key, hidden_dim=LATENT):
    """f32 reference params, nn.Linear-style U(-1/sqrt(fan_in), 1/sqrt(fan_in)).
    Stored as (in_features, out_features) weights and (1, out_features) biases."""
    def linear(key, fan_in, fan_out):
        kw, kb = jax.random.split(key)
        bound = 1.0 / jnp.sqrt(fan_in)
        w = jax.random.uniform(kw, (fan_in, fan_out), jnp.float32, -bound, bound)
        b = jax.random.uniform(kb, (1, fan_out), jnp.float32, -bound, bound)
        return w, b

    k1, k2, k3, k4 = jax.random.split(key, 4)
    w1, b1 = linear(k1, IN_DIM, HID)          # encoder Linear(13, 64)
    w2, b2 = linear(k2, HID, hidden_dim)      # encoder Linear(64, hidden_dim)
    w3, b3 = linear(k3, hidden_dim, HID)      # decoder Linear(hidden_dim, 64)
    w4, b4 = linear(k4, HID, IN_DIM)          # decoder Linear(64, 13)
    return {"w1": w1, "b1": b1, "w2": w2, "b2": b2,
            "w3": w3, "b3": b3, "w4": w4, "b4": b4}


def prepare_params(params):
    """One-time conversion to the kernel layout: transpose to (out, in),
    zero-pad 13 -> 16, cast weights to bf16.  Layer-1 bias is folded into
    column 13 of w1t (it multiplies the ones-row of x^T); other biases stay
    f32 column vectors (cast to the compute dtype inside the kernel)."""
    def pad_wt(w, out_pad, in_pad):
        wt = w.T.astype(jnp.bfloat16)                 # (out, in)
        out_d, in_d = wt.shape
        return jnp.zeros((out_pad, in_pad), jnp.bfloat16).at[:out_d, :in_d].set(wt)

    def pad_b(b, out_pad):
        b = b.reshape(-1).astype(jnp.float32)
        return jnp.zeros((out_pad, 1), jnp.float32).at[:b.shape[0], 0].set(b)

    w1t = pad_wt(params["w1"], HID, F_PAD)
    w1t = w1t.at[:, IN_DIM].set(params["b1"].reshape(-1).astype(jnp.bfloat16))

    return {
        "w1t": w1t,
        "w2t": pad_wt(params["w2"], F_PAD, HID), "b2": pad_b(params["b2"], F_PAD),
        "w3t": pad_wt(params["w3"], HID, F_PAD), "b3": pad_b(params["b3"], HID),
        "w4t": pad_wt(params["w4"], F_PAD, HID), "b4": pad_b(params["b4"], F_PAD),
    }


def autoencoder_apply_tfmt(xt, kparams, *, act_dtype=None, tb_cap=4096):
    """Feature-major fast path (no relayout).

    xt: (F_PAD, B_pad) bf16 with B_pad % 128 == 0, row IN_DIM == 1.0 (ones-row
    for the folded layer-1 bias) and rows IN_DIM+1.. == 0.  Returns the
    feature-major (F_PAD, B_pad) bf16 output.  Use this directly when
    activations are kept feature-major across calls, to avoid the wrapper
    relayout passes in `autoencoder_forward`.
    """
    F, B_pad = xt.shape
    assert F == F_PAD and B_pad % 128 == 0, (F, B_pad)
    if act_dtype is None:
        act_dtype = _default_act_dtype()

    TB = _choose_tb(B_pad, cap=tb_cap)
    grid = (B_pad // TB,)

    batch_spec = pl.BlockSpec((F_PAD, TB), lambda i: (0, i))
    const = lambda shape: pl.BlockSpec(shape, lambda i: (0, 0))   # VMEM-resident

    flops = 4 * (2 * F_PAD * HID) * B_pad
    transcendentals = (HID + F_PAD + HID) * B_pad
    bytes_accessed = (2 * F_PAD * B_pad * 2          # bf16 x^T in + y^T out
                      + 4 * F_PAD * HID * 2          # bf16 weights
                      + (2 * F_PAD + HID) * 4)       # f32 biases b2/b3/b4

    kernel = functools.partial(_ae_kernel, act_dtype=act_dtype)

    return pl.pallas_call(
        kernel,
        out_shape=jax.ShapeDtypeStruct((F_PAD, B_pad), jnp.bfloat16),
        grid=grid,
        in_specs=[
            batch_spec,
            const((HID, F_PAD)),
            const((F_PAD, HID)), const((F_PAD, 1)),
            const((HID, F_PAD)), const((HID, 1)),
            const((F_PAD, HID)), const((F_PAD, 1)),
        ],
        out_specs=batch_spec,
        compiler_params=pltpu.CompilerParams(
            dimension_semantics=("parallel",)),
        cost_estimate=pl.CostEstimate(
            flops=int(flops),
            transcendentals=int(transcendentals),
            bytes_accessed=int(bytes_accessed)),
    )(xt,
      kparams["w1t"],
      kparams["w2t"], kparams["b2"],
      kparams["w3t"], kparams["b3"],
      kparams["w4t"], kparams["b4"])


def autoencoder_forward(x, kparams, *, act_dtype=None, tb_cap=4096):
    """x: (B, 13) float32. kparams: output of prepare_params. Returns (B, 13) f32."""
    B = x.shape[0]
    TB = _choose_tb(B, cap=tb_cap)
    B_pad = _round_up(B, TB)

    # Layout plumbing: one fused pad+transpose+cast pass each way, in bf16
    # (half the bytes of the previous f32 relayout).  Callers able to keep
    # activations feature-major should call autoencoder_apply_tfmt directly.
    xt = jnp.zeros((F_PAD, B_pad), jnp.bfloat16)
    xt = xt.at[IN_DIM, :].set(1.0)                                   # ones-row: folded b1
    xt = xt.at[:IN_DIM, :B].set(x.astype(jnp.bfloat16).T)

    out_t = autoencoder_apply_tfmt(xt, kparams, act_dtype=act_dtype, tb_cap=tb_cap)
    return out_t[:IN_DIM, :B].T.astype(jnp.float32)


def autoencoder_ref(x, p):
    """Pure-f32 reference matching the PyTorch forward."""
    h = jnp.tanh(x @ p["w1"] + p["b1"])
    z = jnp.tanh(h @ p["w2"] + p["b2"])
    h2 = jnp.tanh(z @ p["w3"] + p["b3"])
    return h2 @ p["w4"] + p["b4"]


if __name__ == "__main__":
    key = jax.random.PRNGKey(0)
    kp, kx = jax.random.split(key)

    B = 8
    params = init_params(kp)
    kparams = prepare_params(params)
    x = jax.random.normal(kx, (B, IN_DIM), jnp.float32)

    out = autoencoder_forward(x, kparams)
    out = jax.block_until_ready(out)

    ref = autoencoder_ref(x, params)
    assert out.shape == (B, IN_DIM), out.shape
    assert bool(jnp.all(jnp.isfinite(out)))
    # bf16 weights + bf16 activations through the MXU (f32 accumulate) and a
    # bf16 output store -> bf16-level tolerance vs the f32 reference.
    err = float(jnp.max(jnp.abs(out - ref)))
    assert jnp.allclose(out, ref, atol=1e-1, rtol=1e-1), err

    print("KERNEL_OK")
</pallas_src>

<mosaic_0001>
module attributes {stable_mosaic.version = 11 : i64} {
  func.func @_ae_kernel(%arg0: i32, %arg1: memref<16x128xbf16, #tpu.memory_space<vmem>>, %arg2: memref<64x16xbf16, #tpu.memory_space<vmem>>, %arg3: memref<16x64xbf16, #tpu.memory_space<vmem>>, %arg4: memref<16x1xf32, #tpu.memory_space<vmem>>, %arg5: memref<64x16xbf16, #tpu.memory_space<vmem>>, %arg6: memref<64x1xf32, #tpu.memory_space<vmem>>, %arg7: memref<16x64xbf16, #tpu.memory_space<vmem>>, %arg8: memref<16x1xf32, #tpu.memory_space<vmem>>, %arg9: memref<16x128xbf16, #tpu.memory_space<vmem>>) attributes {dimension_semantics = [#tpu.dimension_semantics<parallel>], iteration_bounds = array<i64: 1>, scalar_prefetch = 0 : i64, scratch_operands = 0 : i64, tpu.core_type = #tpu.core_type<tc>, window_params = [{transform_indices = @transform_0, window_bounds = array<i64: 16, 128>}, {pipeline_mode = #tpu.pipeline_mode<synchronous>, transform_indices = @transform_1, window_bounds = array<i64: 64, 16>}, {pipeline_mode = #tpu.pipeline_mode<synchronous>, transform_indices = @transform_2, window_bounds = array<i64: 16, 64>}, {pipeline_mode = #tpu.pipeline_mode<synchronous>, transform_indices = @transform_3, window_bounds = array<i64: 16, 1>}, {pipeline_mode = #tpu.pipeline_mode<synchronous>, transform_indices = @transform_4, window_bounds = array<i64: 64, 16>}, {pipeline_mode = #tpu.pipeline_mode<synchronous>, transform_indices = @transform_5, window_bounds = array<i64: 64, 1>}, {pipeline_mode = #tpu.pipeline_mode<synchronous>, transform_indices = @transform_6, window_bounds = array<i64: 16, 64>}, {pipeline_mode = #tpu.pipeline_mode<synchronous>, transform_indices = @transform_7, window_bounds = array<i64: 16, 1>}, {transform_indices = @transform_8, window_bounds = array<i64: 16, 128>}]} {
    %c0 = arith.constant 0 : index
    %c0_0 = arith.constant 0 : index
    %0 = vector.load %arg1[%c0, %c0_0] : memref<16x128xbf16, #tpu.memory_space<vmem>>, vector<16x128xbf16>
    %c0_1 = arith.constant 0 : index
    %c0_2 = arith.constant 0 : index
    %1 = vector.load %arg2[%c0_1, %c0_2] : memref<64x16xbf16, #tpu.memory_space<vmem>>, vector<64x16xbf16>
    %cst = arith.constant dense<0.000000e+00> : vector<64x128xf32>
    %2 = tpu.matmul %1, %0, %cst {dimension_numbers = #tpu.dot_dimension_numbers<[1], [0], [0], [1], [0, 0, 1, 1], [], []>} : vector<64x16xbf16>, vector<16x128xbf16>, vector<64x128xf32> -> vector<64x128xf32>
    %3 = math.tanh %2 : vector<64x128xf32>
    %c0_3 = arith.constant 0 : index
    %c0_4 = arith.constant 0 : index
    %4 = vector.load %arg3[%c0_3, %c0_4] : memref<16x64xbf16, #tpu.memory_space<vmem>>, vector<16x64xbf16>
    %5 = arith.truncf %3 : vector<64x128xf32> to vector<64x128xbf16>
    %cst_5 = arith.constant dense<0.000000e+00> : vector<16x128xf32>
    %6 = tpu.matmul %4, %5, %cst_5 {dimension_numbers = #tpu.dot_dimension_numbers<[1], [0], [0], [1], [0, 0, 1, 1], [], []>} : vector<16x64xbf16>, vector<64x128xbf16>, vector<16x128xf32> -> vector<16x128xf32>
    %c0_6 = arith.constant 0 : index
    %c0_7 = arith.constant 0 : index
    %7 = vector.load %arg4[%c0_6, %c0_7] : memref<16x1xf32, #tpu.memory_space<vmem>>, vector<16x1xf32>
    %8 = vector.broadcast %7 : vector<16x1xf32> to vector<16x128xf32>
    %9 = arith.addf %6, %8 : vector<16x128xf32>
    %10 = math.tanh %9 : vector<16x128xf32>
    %c0_8 = arith.constant 0 : index
    %c0_9 = arith.constant 0 : index
    %11 = vector.load %arg5[%c0_8, %c0_9] : memref<64x16xbf16, #tpu.memory_space<vmem>>, vector<64x16xbf16>
    %12 = arith.truncf %10 : vector<16x128xf32> to vector<16x128xbf16>
    %cst_10 = arith.constant dense<0.000000e+00> : vector<64x128xf32>
    %13 = tpu.matmul %11, %12, %cst_10 {dimension_numbers = #tpu.dot_dimension_numbers<[1], [0], [0], [1], [0, 0, 1, 1], [], []>} : vector<64x16xbf16>, vector<16x128xbf16>, vector<64x128xf32> -> vector<64x128xf32>
    %c0_11 = arith.constant 0 : index
    %c0_12 = arith.constant 0 : index
    %14 = vector.load %arg6[%c0_11, %c0_12] : memref<64x1xf32, #tpu.memory_space<vmem>>, vector<64x1xf32>
    %15 = vector.broadcast %14 : vector<64x1xf32> to vector<64x128xf32>
    %16 = arith.addf %13, %15 : vector<64x128xf32>
    %17 = math.tanh %16 : vector<64x128xf32>
    %c0_13 = arith.constant 0 : index
    %c0_14 = arith.constant 0 : index
    %18 = vector.load %arg7[%c0_13, %c0_14] : memref<16x64xbf16, #tpu.memory_space<vmem>>, vector<16x64xbf16>
    %19 = arith.truncf %17 : vector<64x128xf32> to vector<64x128xbf16>
    %cst_15 = arith.constant dense<0.000000e+00> : vector<16x128xf32>
    %20 = tpu.matmul %18, %19, %cst_15 {dimension_numbers = #tpu.dot_dimension_numbers<[1], [0], [0], [1], [0, 0, 1, 1], [], []>} : vector<16x64xbf16>, vector<64x128xbf16>, vector<16x128xf32> -> vector<16x128xf32>
    %c0_16 = arith.constant 0 : index
    %c0_17 = arith.constant 0 : index
    %21 = vector.load %arg8[%c0_16, %c0_17] : memref<16x1xf32, #tpu.memory_space<vmem>>, vector<16x1xf32>
    %22 = vector.broadcast %21 : vector<16x1xf32> to vector<16x128xf32>
    %23 = arith.addf %20, %22 : vector<16x128xf32>
    %24 = arith.truncf %23 : vector<16x128xf32> to vector<16x128xbf16>
    %c0_18 = arith.constant 0 : index
    %c0_19 = arith.constant 0 : index
    %25 = vector.load %arg9[%c0_18, %c0_19] : memref<16x128xbf16, #tpu.memory_space<vmem>>, vector<16x128xbf16>
    tpu.vector_store %arg9[%c0_18, %c0_19], %24 {strides = array<i32>} : memref<16x128xbf16, #tpu.memory_space<vmem>>, vector<16x128xbf16>,
    return
  }
  func.func @transform_0(%arg0: i32) -> (i32, i32) {
    %c0_i32 = arith.constant 0 : i32
    %c0_i32_0 = arith.constant 0 : i32
    return %c0_i32, %arg0 : i32, i32
  }
  func.func @transform_1(%arg0: i32) -> (i32, i32) {
    %c0_i32 = arith.constant 0 : i32
    %c0_i32_0 = arith.constant 0 : i32
    %c0_i32_1 = arith.constant 0 : i32
    return %c0_i32, %c0_i32_0 : i32, i32
  }
  func.func @transform_2(%arg0: i32) -> (i32, i32) {
    %c0_i32 = arith.constant 0 : i32
    %c0_i32_0 = arith.constant 0 : i32
    %c0_i32_1 = arith.constant 0 : i32
    return %c0_i32, %c0_i32_0 : i32, i32
  }
  func.func @transform_3(%arg0: i32) -> (i32, i32) {
    %c0_i32 = arith.constant 0 : i32
    %c0_i32_0 = arith.constant 0 : i32
    %c0_i32_1 = arith.constant 0 : i32
    return %c0_i32, %c0_i32_0 : i32, i32
  }
  func.func @transform_4(%arg0: i32) -> (i32, i32) {
    %c0_i32 = arith.constant 0 : i32
    %c0_i32_0 = arith.constant 0 : i32
    %c0_i32_1 = arith.constant 0 : i32
    return %c0_i32, %c0_i32_0 : i32, i32
  }
  func.func @transform_5(%arg0: i32) -> (i32, i32) {
    %c0_i32 = arith.constant 0 : i32
    %c0_i32_0 = arith.constant 0 : i32
    %c0_i32_1 = arith.constant 0 : i32
    return %c0_i32, %c0_i32_0 : i32, i32
  }
  func.func @transform_6(%arg0: i32) -> (i32, i32) {
    %c0_i32 = arith.constant 0 : i32
    %c0_i32_0 = arith.constant 0 : i32
    %c0_i32_1 = arith.constant 0 : i32
    return %c0_i32, %c0_i32_0 : i32, i32
  }
  func.func @transform_7(%arg0: i32) -> (i32, i32) {
    %c0_i32 = arith.constant 0 : i32
    %c0_i32_0 = arith.constant 0 : i32
    %c0_i32_1 = arith.constant 0 : i32
    return %c0_i32, %c0_i32_0 : i32, i32
  }
  func.func @transform_8(%arg0: i32) -> (i32, i32) {
    %c0_i32 = arith.constant 0 : i32
    %c0_i32_0 = arith.constant 0 : i32
    return %c0_i32, %arg0 : i32, i32
  }
}

</mosaic_0001>

<llo_original>
// kernel: tpu_custom_call.1
$region0: #{tpu_custom_call.1}
  #allocation0 [shape = 'u32[]', space=smem, size = 0x4, offset = 0x4, fixed_abs, tag = 'smem constant byte address 0x4 - core index']
  #allocation1 [shape = 'u32[144,128]{1,0:T(1,128)}', space=vmem, size = 0x12000, scoped, tag = 'internal scratch']
  %s0 = inlined_call_operand.vmem [shape: bf16[16,128], index: 0, kind: input, shape index: {}]
  %s1 = inlined_call_operand.vmem [shape: bf16[64,16], index: 1, kind: input, shape index: {}]
  %s2 = inlined_call_operand.vmem [shape: bf16[16,64], index: 2, kind: input, shape index: {}]
  %s3 = inlined_call_operand.vmem [shape: f32[16,1], index: 3, kind: input, shape index: {}]
  %s4 = inlined_call_operand.vmem [shape: bf16[64,16], index: 4, kind: input, shape index: {}]
  %s5 = inlined_call_operand.vmem [shape: f32[64,1], index: 5, kind: input, shape index: {}]
  %s6 = inlined_call_operand.vmem [shape: bf16[16,64], index: 6, kind: input, shape index: {}]
  %s7 = inlined_call_operand.vmem [shape: f32[16,1], index: 7, kind: input, shape index: {}]
  %s8 = inlined_call_operand.hbm [shape: bf16[16,128], index: 8, kind: output, shape index: {}]
  %s9 = sld [smem:[#allocation0]]
  $region42: #{tpu_custom_call.1} parent=0
    _
  %s11 = ssub.s32 1, %s9
  %s12 = scalar_select 0, %s11, %s9
  $region1: #{tpu_custom_call.1} parent=0
    #allocation2 [shape = 'u8[4096]{0}', space=vmem, size = 0x1000, scoped, tag = 'output window, operand 0, single buffered']
    #allocation3 [shape = 's32[1]{0}', space=sflag, size = 0x4, scoped, tag = 'scoped memory for tpu_custom_call.1']
    %13 = vsyncpa [#allocation3], 0
    // Predicated region
    $region2: #{tpu_custom_call.1} parent=1 // pred_check
      _
    $region3: #{tpu_custom_call.1} parent=1 // pred_check_branch
      %15 = sbr.rel (0) target = $region5
    $region4: #{tpu_custom_call.1} parent=1 // pred_region
      _
    $region5: #{tpu_custom_call.1} parent=1 // pred_fallthru
      _
    // Predicated region
    $region6: #{tpu_custom_call.1} parent=1 // pred_check
      _
    $region7: #{tpu_custom_call.1} parent=1 // pred_check_branch
      %17 = sbr.rel (0) target = $region9
    $region8: #{tpu_custom_call.1} parent=1 // pred_region
      _
    $region9: #{tpu_custom_call.1} parent=1 // pred_fallthru
      _
    // Predicated region
    $region10: #{tpu_custom_call.1} parent=1 // pred_check
      _
    $region11: #{tpu_custom_call.1} parent=1 // pred_check_branch
      %19 = sbr.rel (0) target = $region13
    $region12: #{tpu_custom_call.1} parent=1 // pred_region
      _
    $region13: #{tpu_custom_call.1} parent=1 // pred_fallthru
      _
    // Predicated region
    $region14: #{tpu_custom_call.1} parent=1 // pred_check
      _
    $region15: #{tpu_custom_call.1} parent=1 // pred_check_branch
      %21 = sbr.rel (0) target = $region17
    $region16: #{tpu_custom_call.1} parent=1 // pred_region
      _
    $region17: #{tpu_custom_call.1} parent=1 // pred_fallthru
      _
    // Predicated region
    $region18: #{tpu_custom_call.1} parent=1 // pred_check
      _
    $region19: #{tpu_custom_call.1} parent=1 // pred_check_branch
      %23 = sbr.rel (0) target = $region21
    $region20: #{tpu_custom_call.1} parent=1 // pred_region
      _
    $region21: #{tpu_custom_call.1} parent=1 // pred_fallthru
      _
    // Predicated region
    $region22: #{tpu_custom_call.1} parent=1 // pred_check
      _
    $region23: #{tpu_custom_call.1} parent=1 // pred_check_branch
      %25 = sbr.rel (0) target = $region25
    $region24: #{tpu_custom_call.1} parent=1 // pred_region
      _
    $region25: #{tpu_custom_call.1} parent=1 // pred_fallthru
      _
    // Predicated region
    $region26: #{tpu_custom_call.1} parent=1 // pred_check
      _
    $region27: #{tpu_custom_call.1} parent=1 // pred_check_branch
      %27 = sbr.rel (0) target = $region29
    $region28: #{tpu_custom_call.1} parent=1 // pred_region
      _
    $region29: #{tpu_custom_call.1} parent=1 // pred_fallthru
      _
    // Predicated region
    $region30: #{tpu_custom_call.1} parent=1 // pred_check
      _
    $region31: #{tpu_custom_call.1} parent=1 // pred_check_branch
      %29 = sbr.rel (0) target = $region33
    $region32: #{tpu_custom_call.1} parent=1 // pred_region
      _
    $region33: #{tpu_custom_call.1} parent=1 // pred_fallthru
      _
    %v31 = vld [vmem:[%s0] sm:$0xf]
    %v32 = vld [vmem:[%s0 + $0x4] sm:$0xf]
    %v33 = vld [vmem:[%s1] sm:$0xf]
    %v34 = vld [vmem:[%s1 + $0x4] sm:$0xf]
    %v35 = vld [vmem:[%s1 + $0x8] sm:$0xf]
    %v36 = vld [vmem:[%s1 + $0xc] sm:$0xf]
    %v37 = vld [vmem:[%s1 + $0x10] sm:$0xf]
    %v38 = vld [vmem:[%s1 + $0x14] sm:$0xf]
    %v39 = vld [vmem:[%s1 + $0x18] sm:$0xf]
    %v40 = vld [vmem:[%s1 + $0x1c] sm:$0xf]
    %v49 = vunpack.c.l.b16 %v33
    %v50 = vunpack.c.l.b16 %v34
    %v51 = vunpack.c.l.b16 %v35
    %v52 = vunpack.c.l.b16 %v36
    %v53 = vunpack.c.l.b16 %v37
    %v54 = vunpack.c.l.b16 %v38
    %v55 = vunpack.c.l.b16 %v39
    %v56 = vunpack.c.l.b16 %v40
    %v57 = vpack.c.b16 %v50, %v49
    %v58 = vpack.c.b16 %v52, %v51
    %v59 = vpack.c.b16 %v54, %v53
    %v60 = vpack.c.b16 %v56, %v55
    %v63 = vunpack.c.l.b16 %v31
    %v64 = vunpack.c.l.b16 %v32
    %v65 = vpack.c.b16 %v64, %v63
    %vm67 = vcmask 130048
    %v69 = vsel %vm67, %v57, 0
    %v72 = vsel %vm67, %v58, 0
    %v75 = vsel %vm67, %v59, 0
    %v78 = vsel %vm67, %v60, 0
    %80 = vmatprep.subr.bf16.mxu0 0
    %81 = vmatpush1.bf16.msra.mxu0 0
    %82 = vmatprep.subr.bf16.mxu0 0
    %83 = vmatpush1.bf16.msra.mxu0 0
    %84 = vmatprep.subr.bf16.mxu0 0
    %85 = vmatpush1.bf16.msra.mxu0 0
    %86 = vmatprep.subr.bf16.mxu0 0
    %87 = vmatpush1.bf16.msra.mxu0 0
    %88 = vmatprep.subr.bf16.mxu0 0
    %89 = vmatpush1.bf16.msra.mxu0 0
    %90 = vmatprep.subr.bf16.mxu0 0
    %91 = vmatpush1.bf16.msra.mxu0 0
    %92 = vmatprep.subr.bf16.mxu0 0
    %93 = vmatpush1.bf16.msra.mxu0 0
    %94 = vmatprep.subr.bf16.mxu0 0
    %95 = vmatpush1.bf16.msra.mxu0 %v65
    %96 = vmatprep.subr.bf16.mxu0 0
    %97 = vmatpush2.bf16.msra.mxu0 0
    %98 = vmatprep.subr.bf16.mxu0 0
    %99 = vmatpush2.bf16.msra.mxu0 0
    %100 = vmatprep.subr.bf16.mxu0 0
    %101 = vmatpush2.bf16.msra.mxu0 0
    %102 = vmatprep.subr.bf16.mxu0 0
    %103 = vmatpush2.bf16.msra.mxu0 0
    %104 = vmatprep.subr.bf16.mxu0 0
    %105 = vmatpush2.bf16.msra.mxu0 0
    %106 = vmatprep.subr.bf16.mxu0 0
    %107 = vmatpush2.bf16.msra.mxu0 0
    %108 = vmatprep.subr.bf16.mxu0 0
    %109 = vmatpush2.bf16.msra.mxu0 0
    %110 = vmatprep.subr.bf16.mxu0 0
    %111 = vmatpush2.bf16.msra.mxu0 0
    %112 = vmatprep.mubr.bf16.mxu0 0
    %113 = vmatmul.mubr.bf16.gmra.mxu0 %v69
    %v114 = vpop.f32.mrf.mxu0
    %v115 = vadd.f32 0.0, %v114
    %v116 = vpop.f32.mrf.mxu0
    %v117 = vpop.f32.mrf.mxu0
    %v118 = vadd.f32 0.0, %v117
    %v119 = vpop.f32.mrf.mxu0
    %120 = vmatprep.mubr.bf16.mxu0 0
    %121 = vmatmul.mubr.bf16.gmra.mxu0 %v72
    %v122 = vpop.f32.mrf.mxu0
    %v123 = vadd.f32 0.0, %v122
    %v124 = vpop.f32.mrf.mxu0
    %v125 = vpop.f32.mrf.mxu0
    %v126 = vadd.f32 0.0, %v125
    %v127 = vpop.f32.mrf.mxu0
    %128 = vmatprep.mubr.bf16.mxu0 0
    %129 = vmatmul.mubr.bf16.gmra.mxu0 %v75
    %v130 = vpop.f32.mrf.mxu0
    %v131 = vadd.f32 0.0, %v130
    %v132 = vpop.f32.mrf.mxu0
    %v133 = vpop.f32.mrf.mxu0
    %v134 = vadd.f32 0.0, %v133
    %v135 = vpop.f32.mrf.mxu0
    %136 = vmatprep.mubr.bf16.mxu0 0
    %137 = vmatmul.mubr.bf16.gmra.mxu0 %v78
    %v138 = vpop.f32.mrf.mxu0
    %v139 = vadd.f32 0.0, %v138
    %v140 = vpop.f32.mrf.mxu0
    %v141 = vpop.f32.mrf.mxu0
    %v142 = vadd.f32 0.0, %v141
    %v143 = vpop.f32.mrf.mxu0
    %144 = vdwg.mxu0
    %v145 = vtanh.pop %v115
    %v146 = vtanh.pop %v118
    %v147 = vtanh.pop %v123
    %v148 = vtanh.pop %v126
    %v149 = vtanh.pop %v131
    %v150 = vtanh.pop %v134
    %v151 = vtanh.pop %v139
    %v152 = vtanh.pop %v142
    %v153 = vld [vmem:[%s2] sm:$0xf]
    %v154 = vld [vmem:[%s2 + $0x4] sm:$0xf]
    %v155 = vpack.c.bf16 %v146, %v145
    %v156 = vpack.c.bf16 %v148, %v147
    %v157 = vpack.c.bf16 %v150, %v149
    %v158 = vpack.c.bf16 %v152, %v151
    %v159 = vld [vmem:[%s3] sm:$0xff]
    %v160 = vld [vmem:[%s3 + $0x8] sm:$0xff]
    %162 = vset.pattern.permute.xlu0 0
    %163 = vperm.xlu0 %162, %v159
    %v164 = vpop.permute.xlu0 %163
    %167 = vset.pattern.permute.xlu0 0
    %168 = vperm.xlu0 %167, %v160
    %v169 = vpop.permute.xlu0 %168
    %v173 = vunpack.c.l.b16 %v153
    %v174 = vunpack.c.l.b16 %v154
    %v175 = vpack.c.b16 %v174, %v173
    %vm176 = vcmask 523264
    %v178 = vsel %vm176, %v175, 0
    %180 = vmatprep.subr.bf16.mxu0 0
    %181 = vmatpush1.bf16.msra.mxu0 0
    %182 = vmatprep.subr.bf16.mxu0 0
    %183 = vmatpush1.bf16.msra.mxu0 0
    %184 = vmatprep.subr.bf16.mxu0 0
    %185 = vmatpush1.bf16.msra.mxu0 0
    %186 = vmatprep.subr.bf16.mxu0 0
    %187 = vmatpush1.bf16.msra.mxu0 0
    %188 = vmatprep.subr.bf16.mxu0 0
    %189 = vmatpush1.bf16.msra.mxu0 %v158
    %190 = vmatprep.subr.bf16.mxu0 0
    %191 = vmatpush1.bf16.msra.mxu0 %v157
    %192 = vmatprep.subr.bf16.mxu0 0
    %193 = vmatpush1.bf16.msra.mxu0 %v156
    %194 = vmatprep.subr.bf16.mxu0 0
    %195 = vmatpush1.bf16.msra.mxu0 %v155
    %196 = vmatprep.subr.bf16.mxu0 0
    %197 = vmatpush2.bf16.msra.mxu0 0
    %198 = vmatprep.subr.bf16.mxu0 0
    %199 = vmatpush2.bf16.msra.mxu0 0
    %200 = vmatprep.subr.bf16.mxu0 0
    %201 = vmatpush2.bf16.msra.mxu0 0
    %202 = vmatprep.subr.bf16.mxu0 0
    %203 = vmatpush2.bf16.msra.mxu0 0
    %204 = vmatprep.subr.bf16.mxu0 0
    %205 = vmatpush2.bf16.msra.mxu0 0
    %206 = vmatprep.subr.bf16.mxu0 0
    %207 = vmatpush2.bf16.msra.mxu0 0
    %208 = vmatprep.subr.bf16.mxu0 0
    %209 = vmatpush2.bf16.msra.mxu0 0
    %210 = vmatprep.subr.bf16.mxu0 0
    %211 = vmatpush2.bf16.msra.mxu0 0
    %212 = vmatprep.mubr.bf16.mxu0 0
    %213 = vmatmul.mubr.bf16.gmra.mxu0 %v178
    %v214 = vpop.f32.mrf.mxu0
    %v215 = vadd.f32 %v164, %v214
    %v216 = vpop.f32.mrf.mxu0
    %v217 = vpop.f32.mrf.mxu0
    %v218 = vadd.f32 %v169, %v217
    %v219 = vpop.f32.mrf.mxu0
    %220 = vdwg.mxu0
    %v221 = vtanh.pop %v215
    %v222 = vtanh.pop %v218
    %v223 = vld [vmem:[%s4] sm:$0xf]
    %v224 = vld [vmem:[%s4 + $0x4] sm:$0xf]
    %v225 = vld [vmem:[%s4 + $0x8] sm:$0xf]
    %v226 = vld [vmem:[%s4 + $0xc] sm:$0xf]
    %v227 = vld [vmem:[%s4 + $0x10] sm:$0xf]
    %v228 = vld [vmem:[%s4 + $0x14] sm:$0xf]
    %v229 = vld [vmem:[%s4 + $0x18] sm:$0xf]
    %v230 = vld [vmem:[%s4 + $0x1c] sm:$0xf]
    %v231 = vpack.c.bf16 %v222, %v221
    %v232 = vld [vmem:[%s5] sm:$0xff]
    %v233 = vld [vmem:[%s5 + $0x8] sm:$0xff]
    %v234 = vld [vmem:[%s5 + $0x10] sm:$0xff]
    %v235 = vld [vmem:[%s5 + $0x18] sm:$0xff]
    %v236 = vld [vmem:[%s5 + $0x20] sm:$0xff]
    %v237 = vld [vmem:[%s5 + $0x28] sm:$0xff]
    %v238 = vld [vmem:[%s5 + $0x30] sm:$0xff]
    %v239 = vld [vmem:[%s5 + $0x38] sm:$0xff]
    %241 = vset.pattern.permute.xlu0 0
    %242 = vperm.xlu0 %241, %v232
    %v243 = vpop.permute.xlu0 %242
    %246 = vset.pattern.permute.xlu0 0
    %247 = vperm.xlu0 %246, %v233
    %v248 = vpop.permute.xlu0 %247
    %251 = vset.pattern.permute.xlu0 0
    %252 = vperm.xlu0 %251, %v234
    %v253 = vpop.permute.xlu0 %252
    %256 = vset.pattern.permute.xlu0 0
    %257 = vperm.xlu0 %256, %v235
    %v258 = vpop.permute.xlu0 %257
    %261 = vset.pattern.permute.xlu0 0
    %262 = vperm.xlu0 %261, %v236
    %v263 = vpop.permute.xlu0 %262
    %266 = vset.pattern.permute.xlu0 0
    %267 = vperm.xlu0 %266, %v237
    %v268 = vpop.permute.xlu0 %267
    %271 = vset.pattern.permute.xlu0 0
    %272 = vperm.xlu0 %271, %v238
    %v273 = vpop.permute.xlu0 %272
    %276 = vset.pattern.permute.xlu0 0
    %277 = vperm.xlu0 %276, %v239
    %v278 = vpop.permute.xlu0 %277
    %v288 = vunpack.c.l.b16 %v223
    %v289 = vunpack.c.l.b16 %v224
    %v290 = vunpack.c.l.b16 %v225
    %v291 = vunpack.c.l.b16 %v226
    %v292 = vunpack.c.l.b16 %v227
    %v293 = vunpack.c.l.b16 %v228
    %v294 = vunpack.c.l.b16 %v229
    %v295 = vunpack.c.l.b16 %v230
    %v296 = vpack.c.b16 %v289, %v288
    %v297 = vpack.c.b16 %v291, %v290
    %v298 = vpack.c.b16 %v293, %v292
    %v299 = vpack.c.b16 %v295, %v294
    %v301 = vsel %vm67, %v296, 0
    %v304 = vsel %vm67, %v297, 0
    %v307 = vsel %vm67, %v298, 0
    %v310 = vsel %vm67, %v299, 0
    %312 = vmatprep.subr.bf16.mxu0 0
    %313 = vmatpush1.bf16.msra.mxu0 0
    %314 = vmatprep.subr.bf16.mxu0 0
    %315 = vmatpush1.bf16.msra.mxu0 0
    %316 = vmatprep.subr.bf16.mxu0 0
    %317 = vmatpush1.bf16.msra.mxu0 0
    %318 = vmatprep.subr.bf16.mxu0 0
    %319 = vmatpush1.bf16.msra.mxu0 0
    %320 = vmatprep.subr.bf16.mxu0 0
    %321 = vmatpush1.bf16.msra.mxu0 0
    %322 = vmatprep.subr.bf16.mxu0 0
    %323 = vmatpush1.bf16.msra.mxu0 0
    %324 = vmatprep.subr.bf16.mxu0 0
    %325 = vmatpush1.bf16.msra.mxu0 0
    %326 = vmatprep.subr.bf16.mxu0 0
    %327 = vmatpush1.bf16.msra.mxu0 %v231
    %328 = vmatprep.subr.bf16.mxu0 0
    %329 = vmatpush2.bf16.msra.mxu0 0
    %330 = vmatprep.subr.bf16.mxu0 0
    %331 = vmatpush2.bf16.msra.mxu0 0
    %332 = vmatprep.subr.bf16.mxu0 0
    %333 = vmatpush2.bf16.msra.mxu0 0
    %334 = vmatprep.subr.bf16.mxu0 0
    %335 = vmatpush2.bf16.msra.mxu0 0
    %336 = vmatprep.subr.bf16.mxu0 0
    %337 = vmatpush2.bf16.msra.mxu0 0
    %338 = vmatprep.subr.bf16.mxu0 0
    %339 = vmatpush2.bf16.msra.mxu0 0
    %340 = vmatprep.subr.bf16.mxu0 0
    %341 = vmatpush2.bf16.msra.mxu0 0
    %342 = vmatprep.subr.bf16.mxu0 0
    %343 = vmatpush2.bf16.msra.mxu0 0
    %344 = vmatprep.mubr.bf16.mxu0 0
    %345 = vmatmul.mubr.bf16.gmra.mxu0 %v301
    %v346 = vpop.f32.mrf.mxu0
    %v347 = vadd.f32 %v243, %v346
    %v348 = vpop.f32.mrf.mxu0
    %v349 = vpop.f32.mrf.mxu0
    %v350 = vadd.f32 %v248, %v349
    %v351 = vpop.f32.mrf.mxu0
    %352 = vmatprep.mubr.bf16.mxu0 0
    %353 = vmatmul.mubr.bf16.gmra.mxu0 %v304
    %v354 = vpop.f32.mrf.mxu0
    %v355 = vadd.f32 %v253, %v354
    %v356 = vpop.f32.mrf.mxu0
    %v357 = vpop.f32.mrf.mxu0
    %v358 = vadd.f32 %v258, %v357
    %v359 = vpop.f32.mrf.mxu0
    %360 = vmatprep.mubr.bf16.mxu0 0
    %361 = vmatmul.mubr.bf16.gmra.mxu0 %v307
    %v362 = vpop.f32.mrf.mxu0
    %v363 = vadd.f32 %v263, %v362
    %v364 = vpop.f32.mrf.mxu0
    %v365 = vpop.f32.mrf.mxu0
    %v366 = vadd.f32 %v268, %v365
    %v367 = vpop.f32.mrf.mxu0
    %368 = vmatprep.mubr.bf16.mxu0 0
    %369 = vmatmul.mubr.bf16.gmra.mxu0 %v310
    %v370 = vpop.f32.mrf.mxu0
    %v371 = vadd.f32 %v273, %v370
    %v372 = vpop.f32.mrf.mxu0
    %v373 = vpop.f32.mrf.mxu0
    %v374 = vadd.f32 %v278, %v373
    %v375 = vpop.f32.mrf.mxu0
    %376 = vdwg.mxu0
    %v377 = vtanh.pop %v347
    %v378 = vtanh.pop %v350
    %v379 = vtanh.pop %v355
    %v380 = vtanh.pop %v358
    %v381 = vtanh.pop %v363
    %v382 = vtanh.pop %v366
    %v383 = vtanh.pop %v371
    %v384 = vtanh.pop %v374
    %v385 = vld [vmem:[%s6] sm:$0xf]
    %v386 = vld [vmem:[%s6 + $0x4] sm:$0xf]
    %v387 = vpack.c.bf16 %v378, %v377
    %v388 = vpack.c.bf16 %v380, %v379
    %v389 = vpack.c.bf16 %v382, %v381
    %v390 = vpack.c.bf16 %v384, %v383
    %v391 = vld [vmem:[%s7] sm:$0xff]
    %v392 = vld [vmem:[%s7 + $0x8] sm:$0xff]
    %394 = vset.pattern.permute.xlu0 0
    %395 = vperm.xlu0 %394, %v391
    %v396 = vpop.permute.xlu0 %395
    %399 = vset.pattern.permute.xlu0 0
    %400 = vperm.xlu0 %399, %v392
    %v401 = vpop.permute.xlu0 %400
    %v405 = vunpack.c.l.b16 %v385
    %v406 = vunpack.c.l.b16 %v386
    %v407 = vpack.c.b16 %v406, %v405
    %v409 = vsel %vm176, %v407, 0
    %411 = vmatprep.subr.bf16.mxu0 0
    %412 = vmatpush1.bf16.msra.mxu0 0
    %413 = vmatprep.subr.bf16.mxu0 0
    %414 = vmatpush1.bf16.msra.mxu0 0
    %415 = vmatprep.subr.bf16.mxu0 0
    %416 = vmatpush1.bf16.msra.mxu0 0
    %417 = vmatprep.subr.bf16.mxu0 0
    %418 = vmatpush1.bf16.msra.mxu0 0
    %419 = vmatprep.subr.bf16.mxu0 0
    %420 = vmatpush1.bf16.msra.mxu0 %v390
    %421 = vmatprep.subr.bf16.mxu0 0
    %422 = vmatpush1.bf16.msra.mxu0 %v389
    %423 = vmatprep.subr.bf16.mxu0 0
    %424 = vmatpush1.bf16.msra.mxu0 %v388
    %425 = vmatprep.subr.bf16.mxu0 0
    %426 = vmatpush1.bf16.msra.mxu0 %v387
    %427 = vmatprep.subr.bf16.mxu0 0
    %428 = vmatpush2.bf16.msra.mxu0 0
    %429 = vmatprep.subr.bf16.mxu0 0
    %430 = vmatpush2.bf16.msra.mxu0 0
    %431 = vmatprep.subr.bf16.mxu0 0
    %432 = vmatpush2.bf16.msra.mxu0 0
    %433 = vmatprep.subr.bf16.mxu0 0
    %434 = vmatpush2.bf16.msra.mxu0 0
    %435 = vmatprep.subr.bf16.mxu0 0
    %436 = vmatpush2.bf16.msra.mxu0 0
    %437 = vmatprep.subr.bf16.mxu0 0
    %438 = vmatpush2.bf16.msra.mxu0 0
    %439 = vmatprep.subr.bf16.mxu0 0
    %440 = vmatpush2.bf16.msra.mxu0 0
    %441 = vmatprep.subr.bf16.mxu0 0
    %442 = vmatpush2.bf16.msra.mxu0 0
    %443 = vmatprep.mubr.bf16.mxu0 0
    %444 = vmatmul.mubr.bf16.gmra.mxu0 %v409
    %v445 = vpop.f32.mrf.mxu0
    %v446 = vadd.f32 %v396, %v445
    %v447 = vpop.f32.mrf.mxu0
    %v448 = vpop.f32.mrf.mxu0
    %v449 = vadd.f32 %v401, %v448
    %v450 = vpop.f32.mrf.mxu0
    %451 = vdwg.mxu0
    %v452 = vpack.c.bf16 %v449, %v446
    %v454 = vunpack.c.l.b16 %v452
    %v455 = vunpack.c.h.b16 %v452
    %v456 = vpack.c.b16 %v454, %v454
    %v457 = vpack.c.b16 %v455, %v455
    %460 = vst [vmem:[#allocation2] sm:$0xf] %v456
    %461 = vst [vmem:[#allocation2 + $0x4] sm:$0xf] %v457
    // Predicated region
    $region34: #{tpu_custom_call.1} parent=1 // pred_check
      _
    $region35: #{tpu_custom_call.1} parent=1 // pred_check_branch
      %463 = sbr.rel (0) target = $region37
    $region36: #{tpu_custom_call.1} parent=1 // pred_region
      %s465 = ssub.s32 128, 128
      %466 = vsyncadd [#allocation3], %s465
      %s467 = sshll.u32 [#allocation2], 4
      %s468 = int_to_ptr.vmem [resolvable:$true] %s467
      %473 = dma.vmem_to_hbm [thread:$0]  %s468, 128, %s8, [#allocation3], 64, 64, 4
    $region37: #{tpu_custom_call.1} parent=1 // pred_fallthru
      _
    // Predicated region
    $region38: #{tpu_custom_call.1} parent=1 // pred_check
      _
    $region39: #{tpu_custom_call.1} parent=1 // pred_check_branch
      %475 = sbr.rel (0) target = $region41
    $region40: #{tpu_custom_call.1} parent=1 // pred_region
      %476 = dma.done [#allocation3], 128
    $region41: #{tpu_custom_call.1} parent=1 // pred_fallthru
      _
    %477 = vsyncpa [#allocation3], 1

</llo_original>
